<compile_context>
chip_gen: v6e
topology: v6e:2x2x1
jax: 0.10.0
libtpu: 0.0.40
codegen_flags: <defaults>
</compile_context>

<pallas_src>
import functools
import math

import jax
import jax.numpy as jnp
from jax import lax
from jax.experimental import pallas as pl
from jax.experimental.pallas import tpu as pltpu

LANE = 128  # pad out_channels to a multiple of the 128-wide lane dimension


def _round_up(x, m):
    return (x + m - 1) // m * m


# ----------------------------- Pallas kernel --------------------------------

def _ngcn_kernel(x_ref, w_ref, b_ref, a_ref, o_ref, h_ref, *, tm, n_pad):
    """Grid (iterations, row_tiles).

    t == 0 : H0[tile] = relu(X[tile] @ W + b)          (stored to scratch slot 0)
    t >= 1 : Ht[tile] = A[tile, :] @ H_{t-1}           (ping-pong scratch slots)
    Every step also stores the freshly computed tile to the (bf16, lane-dense)
    output; the final iteration's stores are the ones that remain in HBM.
    """
    t = pl.program_id(0)                      # propagation iteration
    i = pl.program_id(1)                      # output row tile
    row0 = pl.multiple_of(i * tm, tm)

    @pl.when(t == 0)
    def _():
        h0 = jnp.dot(x_ref[...], w_ref[...], preferred_element_type=jnp.float32)
        h0 = jnp.maximum(h0 + b_ref[...], 0.0)        # (tm, Mp), bias broadcasts
        h_ref[pl.ds(row0, tm), :] = h0.astype(h_ref.dtype)      # slot 0
        o_ref[...] = h0.astype(o_ref.dtype)

    @pl.when(t > 0)
    def _():
        src0 = pl.multiple_of(lax.rem(t - 1, 2) * n_pad, n_pad)
        dst0 = pl.multiple_of(lax.rem(t, 2) * n_pad + row0, tm)
        h_old = h_ref[pl.ds(src0, n_pad), :]                    # (Np, Mp) bf16
        h_new = jnp.dot(a_ref[...], h_old, preferred_element_type=jnp.float32)
        h_ref[pl.ds(dst0, tm), :] = h_new.astype(h_ref.dtype)
        o_ref[...] = h_new.astype(o_ref.dtype)


# ------------------------------ wrappers -------------------------------------

def _fused_forward(x_bf16, w_pad_bf16, b_pad_f32, a_bf16, *, iterations, tm):
    n_pad, f = x_bf16.shape
    mp = w_pad_bf16.shape[1]
    n_tiles = n_pad // tm
    kernel = functools.partial(_ngcn_kernel, tm=tm, n_pad=n_pad)
    return pl.pallas_call(
        kernel,
        out_shape=jax.ShapeDtypeStruct((n_pad, mp), jnp.bfloat16),
        grid_spec=pltpu.PrefetchScalarGridSpec(
            num_scalar_prefetch=0,
            grid=(iterations, n_tiles),
            in_specs=[
                # X row tile (bf16) — only used at t == 0.
                pl.BlockSpec((tm, f), lambda t, i: (i, 0)),
                # W (bf16) and bias (f32): constant block index -> fetched once.
                pl.BlockSpec((f, mp), lambda t, i: (0, 0)),
                pl.BlockSpec((1, mp), lambda t, i: (0, 0)),
                # A row strip (bf16): streamed + double-buffered for t >= 1;
                # pinned to strip 0 at t == 0 so the unused first pass over A
                # is not DMA'd.
                pl.BlockSpec((tm, n_pad),
                             lambda t, i: (jnp.where(t == 0, 0, i), 0)),
            ],
            out_specs=pl.BlockSpec((tm, mp), lambda t, i: (i, 0)),
            scratch_shapes=[
                # Ping-pong H (two Np x Mp slots, bf16), VMEM-resident across
                # the whole iteration chain.
                pltpu.VMEM((2 * n_pad, mp), jnp.bfloat16),
            ],
        ),
        compiler_params=pltpu.CompilerParams(
            # Iterations are a strict sequence; row tiles within an iteration
            # must also stay on one core because H lives in per-core scratch.
            dimension_semantics=("arbitrary", "arbitrary"),
            vmem_limit_bytes=48 * 1024 * 1024,
        ),
    )(x_bf16, w_pad_bf16, b_pad_f32, a_bf16)


def coo_to_dense(indices, values, shape):
    # Matches torch_sparse.spmm semantics: duplicate indices are summed.
    dense = jnp.zeros(shape, dtype=jnp.float32)
    return dense.at[indices[0], indices[1]].add(values.astype(jnp.float32))


@functools.partial(jax.jit, static_argnames=("n_nodes", "in_channels",
                                              "iterations", "row_tile"))
def _forward_impl(feat_indices, feat_values, adj_indices, adj_values,
                  weight, bias, *, n_nodes, in_channels, iterations,
                  row_tile=None):
    out_channels = weight.shape[1]
    tm = row_tile if row_tile is not None else min(256, _round_up(n_nodes, 8))
    n_pad = _round_up(n_nodes, tm)
    mp = _round_up(out_channels, LANE)

    # Densify (padded rows/cols stay zero, so they are inert through the
    # propagation and get sliced off at the end).
    X = coo_to_dense(feat_indices, feat_values, (n_pad, in_channels))
    A = coo_to_dense(adj_indices, adj_values, (n_pad, n_pad))

    w_pad = (jnp.zeros((in_channels, mp), jnp.float32)
             .at[:, :out_channels].set(weight).astype(jnp.bfloat16))
    b_pad = jnp.zeros((1, mp), jnp.float32).at[:, :out_channels].set(bias)

    out_pad = _fused_forward(
        X.astype(jnp.bfloat16), w_pad, b_pad, A.astype(jnp.bfloat16),
        iterations=iterations, tm=tm)
    return out_pad[:n_nodes, :out_channels].astype(jnp.float32)


def sparse_ngcn_forward(normalized_adjacency_matrix, features, weight, bias,
                        iterations, row_tile=None):
    N = int(features["dimensions"][0])
    F = int(features["dimensions"][1])
    return _forward_impl(
        features["indices"], features["values"],
        normalized_adjacency_matrix["indices"],
        normalized_adjacency_matrix["values"],
        weight, bias,
        n_nodes=N, in_channels=F, iterations=iterations, row_tile=row_tile,
    )


def xavier_uniform(key, shape):
    # torch.nn.init.xavier_uniform_ for a 2-D tensor
    fan_out, fan_in = shape[0], shape[1]
    bound = math.sqrt(6.0 / (fan_in + fan_out))
    return jax.random.uniform(key, shape, jnp.float32, minval=-bound, maxval=bound)


# -------------------------------- main ---------------------------------------

if __name__ == "__main__":
    # Module hyperparameters (small, consistent with the forward semantics)
    N = 64               # number of nodes
    in_channels = 32
    out_channels = 16
    iterations = 3
    dropout_rate = 0.5   # identity at inference time

    key = jax.random.PRNGKey(0)
    k_w, k_b, k_fi, k_fv, k_ai, k_av = jax.random.split(key, 6)

    # Deterministic parameter init (Xavier uniform, as in the module __init__)
    weight = xavier_uniform(k_w, (in_channels, out_channels))
    bias = xavier_uniform(k_b, (1, out_channels))

    # Deterministic synthetic sparse feature matrix (COO), N x in_channels
    nnz_feat = 256
    feat_rows = jax.random.randint(k_fi, (nnz_feat,), 0, N)
    feat_cols = jax.random.randint(jax.random.fold_in(k_fi, 1), (nnz_feat,), 0,
                                   in_channels)
    feat_vals = jax.random.uniform(k_fv, (nnz_feat,), jnp.float32)
    features = {
        "indices": jnp.stack([feat_rows, feat_cols]),
        "values": feat_vals,
        "dimensions": (N, in_channels),
    }

    # Deterministic synthetic "normalized" adjacency matrix (COO), N x N
    nnz_adj = 512
    adj_rows = jax.random.randint(k_ai, (nnz_adj,), 0, N)
    adj_cols = jax.random.randint(jax.random.fold_in(k_ai, 1), (nnz_adj,), 0, N)
    adj_vals = jax.random.uniform(k_av, (nnz_adj,), jnp.float32) / float(N)
    normalized_adjacency_matrix = {
        "indices": jnp.stack([adj_rows, adj_cols]),
        "values": adj_vals,
    }

    # Default tiling (single row tile at this small N).
    out = sparse_ngcn_forward(normalized_adjacency_matrix, features,
                              weight, bias, iterations)
    out = jax.block_until_ready(out)
    assert out.shape == (N, out_channels)

    # Forced smaller row tile to exercise the multi-tile streaming + ping-pong
    # scratch path (what a large-N run would use).
    out_tiled = sparse_ngcn_forward(normalized_adjacency_matrix, features,
                                    weight, bias, iterations, row_tile=32)
    out_tiled = jax.block_until_ready(out_tiled)

    # ---- reference checks --------------------------------------------------
    X = coo_to_dense(features["indices"], features["values"], (N, in_channels))
    A = coo_to_dense(normalized_adjacency_matrix["indices"],
                     normalized_adjacency_matrix["values"], (N, N))

    # (a) bf16-operand / f32-accumulate reference (same precision as kernel;
    #     kernel additionally quantizes the stored output to bf16).
    ref16 = jnp.dot(X.astype(jnp.bfloat16), weight.astype(jnp.bfloat16),
                    preferred_element_type=jnp.float32) + bias
    ref16 = jnp.maximum(ref16, 0.0)
    A16 = A.astype(jnp.bfloat16)
    for _ in range(iterations - 1):
        ref16 = jnp.dot(A16, ref16.astype(jnp.bfloat16),
                        preferred_element_type=jnp.float32)
    assert jnp.allclose(out, ref16, atol=1e-4, rtol=2e-2)
    assert jnp.allclose(out_tiled, ref16, atol=1e-4, rtol=2e-2)
    assert jnp.allclose(out, out_tiled, atol=1e-5, rtol=1e-3)

    # (b) full-f32 reference (loose tolerance: kernel uses bf16 MXU operands)
    ref32 = jnp.maximum(X @ weight + bias, 0.0)
    for _ in range(iterations - 1):
        ref32 = A @ ref32
    assert jnp.allclose(out, ref32, atol=1e-3, rtol=5e-2)

    print("KERNEL_OK")
</pallas_src>

<mosaic_0001>
module attributes {stable_mosaic.version = 11 : i64} {
  func.func private @main(%arg0: i32) attributes {dimension_semantics = [#tpu.dimension_semantics<core_parallel>], iteration_bounds = array<i64: 2>, tpu.core_type = #tpu.core_type<sc_scalar_subcore>, window_params = []} {
    return
  }
}

module attributes {stable_mosaic.version = 11 : i64} {
  func.func private @main(%arg0: i32) attributes {dimension_semantics = [#tpu.dimension_semantics<core_parallel>], iteration_bounds = array<i64: 2>, tpu.core_type = #tpu.core_type<sc_scalar_subcore>, window_params = []} {
    return
  }
}

module attributes {stable_mosaic.version = 11 : i64} {
  func.func @_ngcn_kernel(%arg0: i32, %arg1: i32, %arg2: memref<64x32xbf16, #tpu.memory_space<vmem>>, %arg3: memref<32x128xbf16, #tpu.memory_space<vmem>>, %arg4: memref<1x128xf32, #tpu.memory_space<vmem>>, %arg5: memref<64x64xbf16, #tpu.memory_space<vmem>>, %arg6: memref<64x128xbf16, #tpu.memory_space<vmem>>, %arg7: memref<128x128xbf16, #tpu.memory_space<vmem>>) attributes {dimension_semantics = [#tpu.dimension_semantics<arbitrary>, #tpu.dimension_semantics<arbitrary>], iteration_bounds = array<i64: 3, 1>, scalar_prefetch = 0 : i64, scratch_operands = 1 : i64, tpu.core_type = #tpu.core_type<tc>, window_params = [{transform_indices = @transform_0, window_bounds = array<i64: 64, 32>}, {pipeline_mode = #tpu.pipeline_mode<synchronous>, transform_indices = @transform_1, window_bounds = array<i64: 32, 128>}, {pipeline_mode = #tpu.pipeline_mode<synchronous>, transform_indices = @transform_2, window_bounds = array<i64: 1, 128>}, {transform_indices = @transform_3, window_bounds = array<i64: 64, 64>}, {transform_indices = @transform_4, window_bounds = array<i64: 64, 128>}]} {
    %c64_i32 = arith.constant 64 : i32
    %0 = arith.muli %arg1, %c64_i32 : i32
    %1 = tpu.assume_multiple %0, 64 : i32
    %c0_i32 = arith.constant 0 : i32
    %2 = arith.cmpi eq, %arg0, %c0_i32 : i32
    %3 = arith.extui %2 : i1 to i32
    %c0_i32_0 = arith.constant 0 : i32
    %4 = arith.cmpi ne, %3, %c0_i32_0 : i32
    scf.if %4 {
      %c0 = arith.constant 0 : index
      %c0_3 = arith.constant 0 : index
      %8 = vector.load %arg2[%c0, %c0_3] : memref<64x32xbf16, #tpu.memory_space<vmem>>, vector<64x32xbf16>
      %c0_4 = arith.constant 0 : index
      %c0_5 = arith.constant 0 : index
      %9 = vector.load %arg3[%c0_4, %c0_5] : memref<32x128xbf16, #tpu.memory_space<vmem>>, vector<32x128xbf16>
      %cst = arith.constant dense<0.000000e+00> : vector<64x128xf32>
      %10 = tpu.matmul %8, %9, %cst {dimension_numbers = #tpu.dot_dimension_numbers<[1], [0], [0], [1], [0, 0, 1, 1], [], []>} : vector<64x32xbf16>, vector<32x128xbf16>, vector<64x128xf32> -> vector<64x128xf32>
      %c0_6 = arith.constant 0 : index
      %c0_7 = arith.constant 0 : index
      %11 = vector.load %arg4[%c0_6, %c0_7] : memref<1x128xf32, #tpu.memory_space<vmem>>, vector<1x128xf32>
      %12 = vector.broadcast %11 : vector<1x128xf32> to vector<64x128xf32>
      %13 = arith.addf %10, %12 : vector<64x128xf32>
      %cst_8 = arith.constant 0.000000e+00 : f32
      %14 = vector.broadcast %cst_8 : f32 to vector<64x128xf32>
      %15 = arith.maximumf %13, %14 : vector<64x128xf32>
      %16 = arith.truncf %15 : vector<64x128xf32> to vector<64x128xbf16>
      %17 = arith.index_cast %1 : i32 to index
      %c0_9 = arith.constant 0 : index
      %18 = vector.load %arg7[%17, %c0_9] : memref<128x128xbf16, #tpu.memory_space<vmem>>, vector<64x128xbf16>
      tpu.vector_store %arg7[%17, %c0_9], %16 {strides = array<i32>} : memref<128x128xbf16, #tpu.memory_space<vmem>>, vector<64x128xbf16>,
      %19 = arith.truncf %15 : vector<64x128xf32> to vector<64x128xbf16>
      %c0_10 = arith.constant 0 : index
      %c0_11 = arith.constant 0 : index
      %20 = vector.load %arg6[%c0_10, %c0_11] : memref<64x128xbf16, #tpu.memory_space<vmem>>, vector<64x128xbf16>
      tpu.vector_store %arg6[%c0_10, %c0_11], %19 {strides = array<i32>} : memref<64x128xbf16, #tpu.memory_space<vmem>>, vector<64x128xbf16>,
    } else {
    }
    %c0_i32_1 = arith.constant 0 : i32
    %5 = arith.cmpi sgt, %arg0, %c0_i32_1 : i32
    %6 = arith.extui %5 : i1 to i32
    %c0_i32_2 = arith.constant 0 : i32
    %7 = arith.cmpi ne, %6, %c0_i32_2 : i32
    scf.if %7 {
      %c1_i32 = arith.constant 1 : i32
      %8 = arith.subi %arg0, %c1_i32 : i32
      %c2_i32 = arith.constant 2 : i32
      %9 = arith.remsi %8, %c2_i32 : i32
      %c64_i32_3 = arith.constant 64 : i32
      %10 = arith.muli %9, %c64_i32_3 : i32
      %11 = tpu.assume_multiple %10, 64 : i32
      %c2_i32_4 = arith.constant 2 : i32
      %12 = arith.remsi %arg0, %c2_i32_4 : i32
      %c64_i32_5 = arith.constant 64 : i32
      %13 = arith.muli %12, %c64_i32_5 : i32
      %14 = arith.addi %13, %1 : i32
      %15 = tpu.assume_multiple %14, 64 : i32
      %16 = arith.index_cast %11 : i32 to index
      %c0 = arith.constant 0 : index
      %17 = vector.load %arg7[%16, %c0] : memref<128x128xbf16, #tpu.memory_space<vmem>>, vector<64x128xbf16>
      %c0_6 = arith.constant 0 : index
      %c0_7 = arith.constant 0 : index
      %18 = vector.load %arg5[%c0_6, %c0_7] : memref<64x64xbf16, #tpu.memory_space<vmem>>, vector<64x64xbf16>
      %cst = arith.constant dense<0.000000e+00> : vector<64x128xf32>
      %19 = tpu.matmul %18, %17, %cst {dimension_numbers = #tpu.dot_dimension_numbers<[1], [0], [0], [1], [0, 0, 1, 1], [], []>} : vector<64x64xbf16>, vector<64x128xbf16>, vector<64x128xf32> -> vector<64x128xf32>
      %20 = arith.truncf %19 : vector<64x128xf32> to vector<64x128xbf16>
      %21 = arith.index_cast %15 : i32 to index
      %c0_8 = arith.constant 0 : index
      %22 = vector.load %arg7[%21, %c0_8] : memref<128x128xbf16, #tpu.memory_space<vmem>>, vector<64x128xbf16>
      tpu.vector_store %arg7[%21, %c0_8], %20 {strides = array<i32>} : memref<128x128xbf16, #tpu.memory_space<vmem>>, vector<64x128xbf16>,
      %23 = arith.truncf %19 : vector<64x128xf32> to vector<64x128xbf16>
      %c0_9 = arith.constant 0 : index
      %c0_10 = arith.constant 0 : index
      %24 = vector.load %arg6[%c0_9, %c0_10] : memref<64x128xbf16, #tpu.memory_space<vmem>>, vector<64x128xbf16>
      tpu.vector_store %arg6[%c0_9, %c0_10], %23 {strides = array<i32>} : memref<64x128xbf16, #tpu.memory_space<vmem>>, vector<64x128xbf16>,
    } else {
    }
    return
  }
  func.func @transform_0(%arg0: i32, %arg1: i32) -> (i32, i32) {
    %c0_i32 = arith.constant 0 : i32
    %c0_i32_0 = arith.constant 0 : i32
    return %arg1, %c0_i32 : i32, i32
  }
  func.func @transform_1(%arg0: i32, %arg1: i32) -> (i32, i32) {
    %c0_i32 = arith.constant 0 : i32
    %c0_i32_0 = arith.constant 0 : i32
    %c0_i32_1 = arith.constant 0 : i32
    return %c0_i32, %c0_i32_0 : i32, i32
  }
  func.func @transform_2(%arg0: i32, %arg1: i32) -> (i32, i32) {
    %c0_i32 = arith.constant 0 : i32
    %c0_i32_0 = arith.constant 0 : i32
    %c0_i32_1 = arith.constant 0 : i32
    return %c0_i32, %c0_i32_0 : i32, i32
  }
  func.func @transform_3(%arg0: i32, %arg1: i32) -> (i32, i32) {
    %c0_i32 = arith.constant 0 : i32
    %0 = arith.cmpi eq, %arg0, %c0_i32 : i32
    %c0_i32_0 = arith.constant 0 : i32
    %1 = arith.select %0, %c0_i32_0, %arg1 : i32
    %c0_i32_1 = arith.constant 0 : i32
    %c0_i32_2 = arith.constant 0 : i32
    return %1, %c0_i32_1 : i32, i32
  }
  func.func @transform_4(%arg0: i32, %arg1: i32) -> (i32, i32) {
    %c0_i32 = arith.constant 0 : i32
    %c0_i32_0 = arith.constant 0 : i32
    return %arg1, %c0_i32 : i32, i32
  }
}

</mosaic_0001>

<llo_original>
// kernel: _forward_impl.1
$region0: #{_forward_impl.1}
  #allocation0 [shape = 'u32[]', space=smem, size = 0x4, offset = 0x4, fixed_abs, tag = 'smem constant byte address 0x4 - core index']
  #allocation1 [shape = 'u32[144,128]{1,0:T(1,128)}', space=vmem, size = 0x12000, scoped, tag = 'internal scratch']
  #allocation2 [shape = 'bf16[128,128]{1,0:T(8,128)(2,1)}', space=vmem, size = 0x8000, scoped, tag = 'scratch operand']
  %s0 = inlined_call_operand.vmem [shape: bf16[64,32], index: 0, kind: input, shape index: {}]
  %s1 = inlined_call_operand.vmem [shape: bf16[32,128], index: 1, kind: input, shape index: {}]
  %s2 = inlined_call_operand.vmem [shape: f32[1,128], index: 2, kind: input, shape index: {}]
  %s3 = inlined_call_operand.vmem [shape: bf16[64,64], index: 3, kind: input, shape index: {}]
  %s4 = inlined_call_operand.vmem [shape: bf16[64,128], index: 4, kind: output, shape index: {}]
  %s5 = sld [smem:[#allocation0]]
  $region57: #{_forward_impl.1} parent=0
    _
  %s7 = ssub.s32 1, %s5
  %s8 = scalar_select 0, %s7, %s5
  loop: start=0, step=1, limit=5
  $region2: #{_forward_impl.1} parent=0 // loop_pre_header
    _
  $region3: #{_forward_impl.1} parent=0 // loop_header
    %s10 = sphi 0, %s14
    %p11 = scmp.ge.s32.totalorder %s10, 5
    %s17 = sphi 0, %s29
    %s18 = sphi 0, %s25
    %s19 = sphi 0, %s17
    %s20 = sphi 0, %s18
    %s21 = sphi 0, %s19
    %s22 = sphi 0, %s20
    %s32 = sphi 0, %s34
    %s35 = sphi 0, %s32
    %s36 = sphi 0, %s35
    %s52 = sphi 0, %s36
    %s56 = sphi 0, %s56
    %s58 = sphi 0, %s56
    %s59 = sphi 0, %s58
    %s73 = sphi 0, %s59
    %s77 = sphi 0, %s77
    %s79 = sphi 0, %s77
    %s80 = sphi 0, %s79
    %s94 = sphi 0, %s80
    %s104 = sphi 0, %s106
    %s107 = sphi 0, %s104
    %s108 = sphi 0, %s107
    %s124 = sphi 0, %s108
    %s130 = sphi 0, %s132
    %s133 = sphi 0, %s130
    %s134 = sphi 0, %s133
    %s150 = sphi 0, %s134
  $region4: #{_forward_impl.1} parent=0 // loop_header_branch
    %13 = sbr.rel (%p11) target = $region8
  $region5: #{_forward_impl.1} parent=0 // loop_body
    %s15 = ssub.s32 %s10, 1
    %s16 = ssub.s32 %s10, 2
    %s23 = sadd.s32 1, %s18
    %p24 = scmp.ge.s32.totalorder %s23, 1
    %s25 = scalar_select %p24, 0, %s23
    %s26 = sadd.s32 1, %s17
    %s27 = scalar_select %p24, %s26, %s17
    %p28 = scmp.ge.s32.totalorder %s27, 3
    %s29 = scalar_select %p28, 0, %s27
    %s30 = ssub.s32 %s18, %s25
    %p31 = scmp.eq.s32.totalorder %s30, 0
    %s33 = sadd.s32 %s32, 1
    %s34 = scalar_select %p31, %s32, %s33
    %p37 = pneg %p31
    %p38 = scmp.eq.s32.totalorder %s10, 2
    %p39 = por %p37, %p38
    %p40 = scmp.ne.s32.totalorder %s32, %s35
    %p41 = scmp.eq.s32.totalorder %s10, 0
    %p42 = por %p40, %p41
    %p43 = scmp.ne.s32.totalorder %s32, %s35
    %p44 = scmp.eq.s32.totalorder %s15, 2
    %p45 = por %p43, %p44
    %p46 = scmp.ne.s32.totalorder %s35, %s36
    %p47 = scmp.eq.s32.totalorder %s15, 0
    %p48 = por %p46, %p47
    %p49 = scmp.ne.s32.totalorder %s35, %s36
    %p50 = scmp.eq.s32.totalorder %s16, 2
    %p51 = por %p49, %p50
    %p53 = scmp.ne.s32.totalorder %s36, %s52
    %p54 = scmp.eq.s32.totalorder %s16, 0
    %p55 = por %p53, %p54
    %s57 = sadd.s32 %s56, 1
    %p60 = scmp.eq.s32.totalorder %s10, 2
    %p61 = scmp.ne.s32.totalorder %s56, %s58
    %p62 = scmp.eq.s32.totalorder %s10, 0
    %p63 = por %p61, %p62
    %p64 = scmp.ne.s32.totalorder %s56, %s58
    %p65 = scmp.eq.s32.totalorder %s15, 2
    %p66 = por %p64, %p65
    %p67 = scmp.ne.s32.totalorder %s58, %s59
    %p68 = scmp.eq.s32.totalorder %s15, 0
    %p69 = por %p67, %p68
    %p70 = scmp.ne.s32.totalorder %s58, %s59
    %p71 = scmp.eq.s32.totalorder %s16, 2
    %p72 = por %p70, %p71
    %p74 = scmp.ne.s32.totalorder %s59, %s73
    %p75 = scmp.eq.s32.totalorder %s16, 0
    %p76 = por %p74, %p75
    %s78 = sadd.s32 %s77, 1
    %p81 = scmp.eq.s32.totalorder %s10, 2
    %p82 = scmp.ne.s32.totalorder %s77, %s79
    %p83 = scmp.eq.s32.totalorder %s10, 0
    %p84 = por %p82, %p83
    %p85 = scmp.ne.s32.totalorder %s77, %s79
    %p86 = scmp.eq.s32.totalorder %s15, 2
    %p87 = por %p85, %p86
    %p88 = scmp.ne.s32.totalorder %s79, %s80
    %p89 = scmp.eq.s32.totalorder %s15, 0
    %p90 = por %p88, %p89
    %p91 = scmp.ne.s32.totalorder %s79, %s80
    %p92 = scmp.eq.s32.totalorder %s16, 2
    %p93 = por %p91, %p92
    %p95 = scmp.ne.s32.totalorder %s80, %s94
    %p96 = scmp.eq.s32.totalorder %s16, 0
    %p97 = por %p95, %p96
    %p98 = scmp.eq.s32.totalorder %s17, 0
    %s99 = scalar_select %p98, 0, %s18
    %p100 = scmp.eq.s32.totalorder %s29, 0
    %s101 = scalar_select %p100, 0, %s25
    %s102 = ssub.s32 %s99, %s101
    %p103 = scmp.eq.s32.totalorder %s102, 0
    %s105 = sadd.s32 %s104, 1
    %s106 = scalar_select %p103, %s104, %s105
    %p109 = pneg %p103
    %p110 = scmp.eq.s32.totalorder %s10, 2
    %p111 = por %p109, %p110
    %p112 = scmp.ne.s32.totalorder %s104, %s107
    %p113 = scmp.eq.s32.totalorder %s10, 0
    %p114 = por %p112, %p113
    %p115 = scmp.ne.s32.totalorder %s104, %s107
    %p116 = scmp.eq.s32.totalorder %s15, 2
    %p117 = por %p115, %p116
    %p118 = scmp.ne.s32.totalorder %s107, %s108
    %p119 = scmp.eq.s32.totalorder %s15, 0
    %p120 = por %p118, %p119
    %p121 = scmp.ne.s32.totalorder %s107, %s108
    %p122 = scmp.eq.s32.totalorder %s16, 2
    %p123 = por %p121, %p122
    %p125 = scmp.ne.s32.totalorder %s108, %s124
    %p126 = scmp.eq.s32.totalorder %s16, 0
    %p127 = por %p125, %p126
    %s128 = ssub.s32 %s18, %s25
    %p129 = scmp.eq.s32.totalorder %s128, 0
    %s131 = sadd.s32 %s130, 1
    %s132 = scalar_select %p129, %s130, %s131
    %p135 = pneg %p129
    %p136 = scmp.eq.s32.totalorder %s10, 2
    %p137 = por %p135, %p136
    %p138 = scmp.ne.s32.totalorder %s130, %s133
    %p139 = scmp.eq.s32.totalorder %s10, 0
    %p140 = por %p138, %p139
    %p141 = scmp.ne.s32.totalorder %s130, %s133
    %p142 = scmp.eq.s32.totalorder %s15, 2
    %p143 = por %p141, %p142
    %p144 = scmp.ne.s32.totalorder %s133, %s134
    %p145 = scmp.eq.s32.totalorder %s15, 0
    %p146 = por %p144, %p145
    %p147 = scmp.ne.s32.totalorder %s133, %s134
    %p148 = scmp.eq.s32.totalorder %s16, 2
    %p149 = por %p147, %p148
    %p151 = scmp.ne.s32.totalorder %s134, %s150
    %p152 = scmp.eq.s32.totalorder %s16, 0
    %p153 = por %p151, %p152
    %p154 = scmp.le.s32.totalorder 1, %s10
    %p155 = scmp.lt.s32.totalorder %s10, 4
    %p156 = pnand %p154, %p155
    %p157 = pneg %p156
    // Predicated region
    $region9: #{_forward_impl.1} parent=5 // pred_check
      _
    $region10: #{_forward_impl.1} parent=5 // pred_check_branch
      %159 = sbr.rel (%p156) target = $region12
    $region11: #{_forward_impl.1} parent=5 // pred_region
      %s160 = ssub.s32 %s10, 1
      // Predicated region
      $region13: #{_forward_impl.1} parent=11 // pred_check
        %p161 = pneg %p48
      $region14: #{_forward_impl.1} parent=11 // pred_check_branch
        %163 = sbr.rel (%p161) target = $region16
      $region15: #{_forward_impl.1} parent=11 // pred_region
        %s164 = smul.u32 8, %s20
        %p165 = scmp.lt.s32.totalorder %s164, 7
        %s166 = scalar_select %p165, %s164, 7
        %s167 = smul.addr %s166, 4
        %s168 = scalar_lea.vmem %s0, %s167
        %s169 = smul.u32 8, %s20
      $region16: #{_forward_impl.1} parent=11 // pred_fallthru
        _
      // Predicated region
      $region17: #{_forward_impl.1} parent=11 // pred_check
        %p170 = pneg %p69
      $region18: #{_forward_impl.1} parent=11 // pred_check_branch
        %172 = sbr.rel (%p170) target = $region20
      $region19: #{_forward_impl.1} parent=11 // pred_region
        _
      $region20: #{_forward_impl.1} parent=11 // pred_fallthru
        _
      // Predicated region
      $region21: #{_forward_impl.1} parent=11 // pred_check
        %p173 = pneg %p90
      $region22: #{_forward_impl.1} parent=11 // pred_check_branch
        %175 = sbr.rel (%p173) target = $region24
      $region23: #{_forward_impl.1} parent=11 // pred_region
        _
      $region24: #{_forward_impl.1} parent=11 // pred_fallthru
        _
    $region12: #{_forward_impl.1} parent=5 // pred_fallthru
      _
    %p176 = scmp.lt.s32.totalorder %s10, 3
    // Predicated region
    $region25: #{_forward_impl.1} parent=5 // pred_check
      %p177 = pneg %p176
    $region26: #{_forward_impl.1} parent=5 // pred_check_branch
      %179 = sbr.rel (%p177) target = $region28
    $region27: #{_forward_impl.1} parent=5 // pred_region
      // Predicated region
      $region29: #{_forward_impl.1} parent=27 // pred_check
        %p180 = pneg %p114
      $region30: #{_forward_impl.1} parent=27 // pred_check_branch
        %182 = sbr.rel (%p180) target = $region32
      $region31: #{_forward_impl.1} parent=27 // pred_region
        %p183 = scmp.eq.s32.totalorder %s17, 0
        %s184 = scalar_select %p183, 0, %s18
        %s185 = smul.u32 8, %s184
        %p186 = scmp.lt.s32.totalorder %s185, 7
        %s187 = scalar_select %p186, %s185, 7
        %s188 = smul.addr %s187, 4
        %s189 = scalar_lea.vmem %s3, %s188
        %p190 = scmp.eq.s32.totalorder %s17, 0
        %s191 = scalar_select %p190, 0, %s18
        %s192 = smul.u32 8, %s191
      $region32: #{_forward_impl.1} parent=27 // pred_fallthru
        _
    $region28: #{_forward_impl.1} parent=5 // pred_fallthru
      _
    %p193 = scmp.le.s32.totalorder 1, %s10
    %p194 = scmp.lt.s32.totalorder %s10, 4
    %p195 = pnand %p193, %p194
    %p196 = pneg %p195
    // Predicated region
    $region33: #{_forward_impl.1} parent=5 // pred_check
      _
    $region34: #{_forward_impl.1} parent=5 // pred_check_branch
      %198 = sbr.rel (%p195) target = $region36
    $region35: #{_forward_impl.1} parent=5 // pred_region
      %s199 = ssub.s32 %s10, 1
      %s200 = smul.u32 8, %s20
      %p201 = scmp.lt.s32.totalorder %s200, 7
      %s202 = scalar_select %p201, %s200, 7
      %s203 = smul.addr %s202, 4
      %s204 = scalar_lea.vmem %s0, %s203
      %p205 = pneg %p48
      %p206 = pneg %p45
      %p207 = pneg %p69
      %p208 = pneg %p66
      %p209 = pneg %p90
      %p210 = pneg %p87
      %p211 = scmp.eq.s32.totalorder %s19, 0
      %s212 = scalar_select %p211, 0, %s20
      %s213 = smul.u32 8, %s212
      %p214 = scmp.lt.s32.totalorder %s213, 7
      %s215 = scalar_select %p214, %s213, 7
      %s216 = smul.addr %s215, 4
      %s217 = scalar_lea.vmem %s3, %s216
      %p218 = pneg %p120
      %p219 = pneg %p117
      %p220 = pneg %p146
      %p221 = pneg %p143
      %s222 = smul.u32 8, %s20
      %p223 = scmp.lt.s32.totalorder %s222, 7
      %s224 = scalar_select %p223, %s222, 7
      %s225 = smul.addr %s224, 4
      %s226 = scalar_lea.vmem %s4, %s225
      %s227 = smul.u32 8, %s20
      %p228 = scmp.lt.s32.totalorder %s227, 7
      %s229 = scalar_select %p228, %s227, 7
      %s230 = smul.addr %s229, 4
      %s231 = scalar_lea.vmem %s0, %s230
      %s232 = smul.u32 8, %s20
      %p233 = scmp.eq.s32.totalorder %s19, 0
      %s234 = scalar_select %p233, 0, %s20
      %s235 = smul.u32 8, %s234
      %p236 = scmp.lt.s32.totalorder %s235, 7
      %s237 = scalar_select %p236, %s235, 7
      %s238 = smul.addr %s237, 4
      %s239 = scalar_lea.vmem %s3, %s238
      %p240 = scmp.eq.s32.totalorder %s19, 0
      %s241 = scalar_select %p240, 0, %s20
      %s242 = smul.u32 8, %s241
      %s243 = smul.u32 8, %s20
      %p244 = scmp.lt.s32.totalorder %s243, 7
      %s245 = scalar_select %p244, %s243, 7
      %s246 = smul.addr %s245, 4
      %s247 = scalar_lea.vmem %s4, %s246
      %s248 = smul.u32 8, %s20
      %s250 = smul.u32 %s20, 64
      %p251 = scmp.eq.s32.totalorder %s19, 0
      // Predicated region
      $region37: #{_forward_impl.1} parent=35 // pred_check
        %p252 = pneg %p251
      $region38: #{_forward_impl.1} parent=35 // pred_check_branch
        %254 = sbr.rel (%p252) target = $region40
      $region39: #{_forward_impl.1} parent=35 // pred_region
        %v255 = vld [vmem:[%s231] sm:$0xf]
        %v256 = vld [vmem:[%s231 + $0x4] sm:$0xf]
        %v257 = vld [vmem:[%s231 + $0x8] sm:$0xf]
        %v258 = vld [vmem:[%s231 + $0xc] sm:$0xf]
        %v259 = vld [vmem:[%s231 + $0x10] sm:$0xf]
        %v260 = vld [vmem:[%s231 + $0x14] sm:$0xf]
        %v261 = vld [vmem:[%s231 + $0x18] sm:$0xf]
        %v262 = vld [vmem:[%s231 + $0x1c] sm:$0xf]
        %v263 = vld [vmem:[%s1] sm:$0xf]
        %v264 = vld [vmem:[%s1 + $0x4] sm:$0xf]
        %v265 = vld [vmem:[%s1 + $0x8] sm:$0xf]
        %v266 = vld [vmem:[%s1 + $0xc] sm:$0xf]
        %v267 = vld [vmem:[%s2] sm:$0x1]
        %v269 = vlaneseq
        %v270 = vshrl.u32 %v269, 7
        %v271 = vsub.s32 0, %v270
        %v272 = vrot.slane %v267, %v271
        %v282 = vunpack.c.l.b16 %v255
        %v283 = vunpack.c.l.b16 %v256
        %v284 = vunpack.c.l.b16 %v257
        %v285 = vunpack.c.l.b16 %v258
        %v286 = vunpack.c.l.b16 %v259
        %v287 = vunpack.c.l.b16 %v260
        %v288 = vunpack.c.l.b16 %v261
        %v289 = vunpack.c.l.b16 %v262
        %v290 = vpack.c.b16 %v283, %v282
        %v291 = vpack.c.b16 %v285, %v284
        %v292 = vpack.c.b16 %v287, %v286
        %v293 = vpack.c.b16 %v289, %v288
        %v298 = vunpack.c.l.b16 %v263
        %v299 = vunpack.c.l.b16 %v264
        %v300 = vunpack.c.l.b16 %v265
        %v301 = vunpack.c.l.b16 %v266
        %v302 = vpack.c.b16 %v299, %v298
        %v303 = vpack.c.b16 %v301, %v300
        %vm306 = vcmask 261120
        %v308 = vsel %vm306, %v290, 0
        %v311 = vsel %vm306, %v291, 0
        %v314 = vsel %vm306, %v292, 0
        %v317 = vsel %vm306, %v293, 0
        %319 = vmatprep.subr.bf16.mxu0 0
        %320 = vmatpush1.bf16.msra.mxu0 0
        %321 = vmatprep.subr.bf16.mxu0 0
        %322 = vmatpush1.bf16.msra.mxu0 0
        %323 = vmatprep.subr.bf16.mxu0 0
        %324 = vmatpush1.bf16.msra.mxu0 0
        %325 = vmatprep.subr.bf16.mxu0 0
        %326 = vmatpush1.bf16.msra.mxu0 0
        %327 = vmatprep.subr.bf16.mxu0 0
        %328 = vmatpush1.bf16.msra.mxu0 0
        %329 = vmatprep.subr.bf16.mxu0 0
        %330 = vmatpush1.bf16.msra.mxu0 0
        %331 = vmatprep.subr.bf16.mxu0 0
        %332 = vmatpush1.bf16.msra.mxu0 %v303
        %333 = vmatprep.subr.bf16.mxu0 0
        %334 = vmatpush1.bf16.msra.mxu0 %v302
        %335 = vmatprep.subr.bf16.mxu0 0
        %336 = vmatpush2.bf16.msra.mxu0 0
        %337 = vmatprep.subr.bf16.mxu0 0
        %338 = vmatpush2.bf16.msra.mxu0 0
        %339 = vmatprep.subr.bf16.mxu0 0
        %340 = vmatpush2.bf16.msra.mxu0 0
        %341 = vmatprep.subr.bf16.mxu0 0
        %342 = vmatpush2.bf16.msra.mxu0 0
        %343 = vmatprep.subr.bf16.mxu0 0
        %344 = vmatpush2.bf16.msra.mxu0 0
        %345 = vmatprep.subr.bf16.mxu0 0
        %346 = vmatpush2.bf16.msra.mxu0 0
        %347 = vmatprep.subr.bf16.mxu0 0
        %348 = vmatpush2.bf16.msra.mxu0 0
        %349 = vmatprep.subr.bf16.mxu0 0
        %350 = vmatpush2.bf16.msra.mxu0 0
        %351 = vmatprep.mubr.bf16.mxu0 0
        %352 = vmatmul.mubr.bf16.gmra.mxu0 %v308
        %v353 = vpop.f32.mrf.mxu0
        %v354 = vadd.f32 %v272, %v353
        %v355 = vpop.f32.mrf.mxu0
        %v356 = vpop.f32.mrf.mxu0
        %v357 = vadd.f32 %v272, %v356
        %v358 = vpop.f32.mrf.mxu0
        %359 = vmatprep.mubr.bf16.mxu0 0
        %360 = vmatmul.mubr.bf16.gmra.mxu0 %v311
        %v361 = vpop.f32.mrf.mxu0
        %v362 = vadd.f32 %v272, %v361
        %v363 = vpop.f32.mrf.mxu0
        %v364 = vpop.f32.mrf.mxu0
        %v365 = vadd.f32 %v272, %v364
        %v366 = vpop.f32.mrf.mxu0
        %367 = vmatprep.mubr.bf16.mxu0 0
        %368 = vmatmul.mubr.bf16.gmra.mxu0 %v314
        %v369 = vpop.f32.mrf.mxu0
        %v370 = vadd.f32 %v272, %v369
        %v371 = vpop.f32.mrf.mxu0
        %v372 = vpop.f32.mrf.mxu0
        %v373 = vadd.f32 %v272, %v372
        %v374 = vpop.f32.mrf.mxu0
        %375 = vmatprep.mubr.bf16.mxu0 0
        %376 = vmatmul.mubr.bf16.gmra.mxu0 %v317
        %v377 = vpop.f32.mrf.mxu0
        %v378 = vadd.f32 %v272, %v377
        %v379 = vpop.f32.mrf.mxu0
        %v380 = vpop.f32.mrf.mxu0
        %v381 = vadd.f32 %v272, %v380
        %v382 = vpop.f32.mrf.mxu0
        %383 = vdwg.mxu0
        %v384 = vmax.f32 %v354, 0.0
        %v385 = vmax.f32 %v357, 0.0
        %v386 = vmax.f32 %v362, 0.0
        %v387 = vmax.f32 %v365, 0.0
        %v388 = vmax.f32 %v370, 0.0
        %v389 = vmax.f32 %v373, 0.0
        %v390 = vmax.f32 %v378, 0.0
        %v391 = vmax.f32 %v381, 0.0
        %v392 = vpack.c.bf16 %v385, %v384
        %v393 = vpack.c.bf16 %v387, %v386
        %v394 = vpack.c.bf16 %v389, %v388
        %v395 = vpack.c.bf16 %v391, %v390
        %v400 = vunpack.c.l.b16 %v392
        %v401 = vunpack.c.h.b16 %v392
        %v402 = vunpack.c.l.b16 %v393
        %v403 = vunpack.c.h.b16 %v393
        %v404 = vunpack.c.l.b16 %v394
        %v405 = vunpack.c.h.b16 %v394
        %v406 = vunpack.c.l.b16 %v395
        %v407 = vunpack.c.h.b16 %v395
        %v408 = vpack.c.b16 %v400, %v400
        %v409 = vpack.c.b16 %v401, %v401
        %v410 = vpack.c.b16 %v402, %v402
        %v411 = vpack.c.b16 %v403, %v403
        %v412 = vpack.c.b16 %v404, %v404
        %v413 = vpack.c.b16 %v405, %v405
        %v414 = vpack.c.b16 %v406, %v406
        %v415 = vpack.c.b16 %v407, %v407
        %s424 = sshra.s32 %s250, 3
        %s425 = sand.u32 %s250, 7
        %s426 = smul.addr %s424, 4
        %s427 = scalar_lea.vmem [#allocation2], %s426
        %428 = vst [vmem:[%s427] sm:$0xf] %v408
        %429 = vst [vmem:[%s427 + $0x4] sm:$0xf] %v409
        %430 = vst [vmem:[%s427 + $0x8] sm:$0xf] %v410
        %431 = vst [vmem:[%s427 + $0xc] sm:$0xf] %v411
        %432 = vst [vmem:[%s427 + $0x10] sm:$0xf] %v412
        %433 = vst [vmem:[%s427 + $0x14] sm:$0xf] %v413
        %434 = vst [vmem:[%s427 + $0x18] sm:$0xf] %v414
        %435 = vst [vmem:[%s427 + $0x1c] sm:$0xf] %v415
        %436 = vst [vmem:[%s247] sm:$0xf] %v408
        %437 = vst [vmem:[%s247 + $0x4] sm:$0xf] %v409
        %438 = vst [vmem:[%s247 + $0x8] sm:$0xf] %v410
        %439 = vst [vmem:[%s247 + $0xc] sm:$0xf] %v411
        %440 = vst [vmem:[%s247 + $0x10] sm:$0xf] %v412
        %441 = vst [vmem:[%s247 + $0x14] sm:$0xf] %v413
        %442 = vst [vmem:[%s247 + $0x18] sm:$0xf] %v414
        %443 = vst [vmem:[%s247 + $0x1c] sm:$0xf] %v415
      $region40: #{_forward_impl.1} parent=35 // pred_fallthru
        _
      %p444 = scmp.gt.s32.totalorder %s19, 0
      // Predicated region
      $region41: #{_forward_impl.1} parent=35 // pred_check
        %p445 = pneg %p444
      $region42: #{_forward_impl.1} parent=35 // pred_check_branch
        %447 = sbr.rel (%p445) target = $region44
      $region43: #{_forward_impl.1} parent=35 // pred_region
        %s448 = ssub.s32 %s19, 1
        %p449 = scmp.lt.s32.totalorder %s448, 0
        %s450 = ssub.s32 0, %s448
        %s451 = scalar_select %p449, %s450, %s448
        %s452 = sand.u32 %s451, 1
        %s453 = ssub.s32 0, %s452
        %s454 = scalar_select %p449, %s453, %s452
        %s455 = smul.u32 %s454, 64
        %p456 = scmp.lt.s32.totalorder %s19, 0
        %s457 = ssub.s32 0, %s19
        %s458 = scalar_select %p456, %s457, %s19
        %s459 = sand.u32 %s458, 1
        %s460 = ssub.s32 0, %s459
        %s461 = scalar_select %p456, %s460, %s459
        %s462 = smul.u32 %s461, 64
        %s463 = sadd.s32 %s462, %s250
        %s464 = sshra.s32 %s455, 3
        %s465 = sand.u32 %s455, 7
        %s466 = smul.addr %s464, 4
        %s467 = scalar_lea.vmem [#allocation2], %s466
        %v468 = vld [vmem:[%s467] sm:$0xf]
        %v469 = vld [vmem:[%s467 + $0x4] sm:$0xf]
        %v470 = vld [vmem:[%s467 + $0x8] sm:$0xf]
        %v471 = vld [vmem:[%s467 + $0xc] sm:$0xf]
        %v472 = vld [vmem:[%s467 + $0x10] sm:$0xf]
        %v473 = vld [vmem:[%s467 + $0x14] sm:$0xf]
        %v474 = vld [vmem:[%s467 + $0x18] sm:$0xf]
        %v475 = vld [vmem:[%s467 + $0x1c] sm:$0xf]
        %v476 = vld [vmem:[%s239] sm:$0xf]
        %v477 = vld [vmem:[%s239 + $0x4] sm:$0xf]
        %v478 = vld [vmem:[%s239 + $0x8] sm:$0xf]
        %v479 = vld [vmem:[%s239 + $0xc] sm:$0xf]
        %v480 = vld [vmem:[%s239 + $0x10] sm:$0xf]
        %v481 = vld [vmem:[%s239 + $0x14] sm:$0xf]
        %v482 = vld [vmem:[%s239 + $0x18] sm:$0xf]
        %v483 = vld [vmem:[%s239 + $0x1c] sm:$0xf]
        %v492 = vunpack.c.l.b16 %v476
        %v493 = vunpack.c.l.b16 %v477
        %v494 = vunpack.c.l.b16 %v478
        %v495 = vunpack.c.l.b16 %v479
        %v496 = vunpack.c.l.b16 %v480
        %v497 = vunpack.c.l.b16 %v481
        %v498 = vunpack.c.l.b16 %v482
        %v499 = vunpack.c.l.b16 %v483
        %v500 = vpack.c.b16 %v493, %v492
        %v501 = vpack.c.b16 %v495, %v494
        %v502 = vpack.c.b16 %v497, %v496
        %v503 = vpack.c.b16 %v499, %v498
        %v512 = vunpack.c.l.b16 %v468
        %v513 = vunpack.c.l.b16 %v469
        %v514 = vunpack.c.l.b16 %v470
        %v515 = vunpack.c.l.b16 %v471
        %v516 = vunpack.c.l.b16 %v472
        %v517 = vunpack.c.l.b16 %v473
        %v518 = vunpack.c.l.b16 %v474
        %v519 = vunpack.c.l.b16 %v475
        %v520 = vpack.c.b16 %v513, %v512
        %v521 = vpack.c.b16 %v515, %v514
        %v522 = vpack.c.b16 %v517, %v516
        %v523 = vpack.c.b16 %v519, %v518
        %vm528 = vcmask 523264
        %v530 = vsel %vm528, %v500, 0
        %v533 = vsel %vm528, %v501, 0
        %v536 = vsel %vm528, %v502, 0
        %v539 = vsel %vm528, %v503, 0
        %541 = vmatprep.subr.bf16.mxu0 0
        %542 = vmatpush1.bf16.msra.mxu0 0
        %543 = vmatprep.subr.bf16.mxu0 0
        %544 = vmatpush1.bf16.msra.mxu0 0
        %545 = vmatprep.subr.bf16.mxu0 0
        %546 = vmatpush1.bf16.msra.mxu0 0
        %547 = vmatprep.subr.bf16.mxu0 0
        %548 = vmatpush1.bf16.msra.mxu0 0
        %549 = vmatprep.subr.bf16.mxu0 0
        %550 = vmatpush1.bf16.msra.mxu0 %v523
        %551 = vmatprep.subr.bf16.mxu0 0
        %552 = vmatpush1.bf16.msra.mxu0 %v522
        %553 = vmatprep.subr.bf16.mxu0 0
        %554 = vmatpush1.bf16.msra.mxu0 %v521
        %555 = vmatprep.subr.bf16.mxu0 0
        %556 = vmatpush1.bf16.msra.mxu0 %v520
        %557 = vmatprep.subr.bf16.mxu0 0
        %558 = vmatpush2.bf16.msra.mxu0 0
        %559 = vmatprep.subr.bf16.mxu0 0
        %560 = vmatpush2.bf16.msra.mxu0 0
        %561 = vmatprep.subr.bf16.mxu0 0
        %562 = vmatpush2.bf16.msra.mxu0 0
        %563 = vmatprep.subr.bf16.mxu0 0
        %564 = vmatpush2.bf16.msra.mxu0 0
        %565 = vmatprep.subr.bf16.mxu0 0
        %566 = vmatpush2.bf16.msra.mxu0 0
        %567 = vmatprep.subr.bf16.mxu0 0
        %568 = vmatpush2.bf16.msra.mxu0 0
        %569 = vmatprep.subr.bf16.mxu0 0
        %570 = vmatpush2.bf16.msra.mxu0 0
        %571 = vmatprep.subr.bf16.mxu0 0
        %572 = vmatpush2.bf16.msra.mxu0 0
        %573 = vmatprep.mubr.bf16.mxu0 0
        %574 = vmatmul.mubr.bf16.gmra.mxu0 %v530
        %v575 = vpop.f32.mrf.mxu0
        %v576 = vadd.f32 0.0, %v575
        %v577 = vpop.f32.mrf.mxu0
        %v578 = vpop.f32.mrf.mxu0
        %v579 = vadd.f32 0.0, %v578
        %v580 = vpop.f32.mrf.mxu0
        %581 = vmatprep.mubr.bf16.mxu0 0
        %582 = vmatmul.mubr.bf16.gmra.mxu0 %v533
        %v583 = vpop.f32.mrf.mxu0
        %v584 = vadd.f32 0.0, %v583
        %v585 = vpop.f32.mrf.mxu0
        %v586 = vpop.f32.mrf.mxu0
        %v587 = vadd.f32 0.0, %v586
        %v588 = vpop.f32.mrf.mxu0
        %589 = vmatprep.mubr.bf16.mxu0 0
        %590 = vmatmul.mubr.bf16.gmra.mxu0 %v536
        %v591 = vpop.f32.mrf.mxu0
        %v592 = vadd.f32 0.0, %v591
        %v593 = vpop.f32.mrf.mxu0
        %v594 = vpop.f32.mrf.mxu0
        %v595 = vadd.f32 0.0, %v594
        %v596 = vpop.f32.mrf.mxu0
        %597 = vmatprep.mubr.bf16.mxu0 0
        %598 = vmatmul.mubr.bf16.gmra.mxu0 %v539
        %v599 = vpop.f32.mrf.mxu0
        %v600 = vadd.f32 0.0, %v599
        %v601 = vpop.f32.mrf.mxu0
        %v602 = vpop.f32.mrf.mxu0
        %v603 = vadd.f32 0.0, %v602
        %v604 = vpop.f32.mrf.mxu0
        %605 = vdwg.mxu0
        %v606 = vpack.c.bf16 %v579, %v576
        %v607 = vpack.c.bf16 %v587, %v584
        %v608 = vpack.c.bf16 %v595, %v592
        %v609 = vpack.c.bf16 %v603, %v600
        %v614 = vunpack.c.l.b16 %v606
        %v615 = vunpack.c.h.b16 %v606
        %v616 = vunpack.c.l.b16 %v607
        %v617 = vunpack.c.h.b16 %v607
        %v618 = vunpack.c.l.b16 %v608
        %v619 = vunpack.c.h.b16 %v608
        %v620 = vunpack.c.l.b16 %v609
        %v621 = vunpack.c.h.b16 %v609
        %v622 = vpack.c.b16 %v614, %v614
        %v623 = vpack.c.b16 %v615, %v615
        %v624 = vpack.c.b16 %v616, %v616
        %v625 = vpack.c.b16 %v617, %v617
        %v626 = vpack.c.b16 %v618, %v618
        %v627 = vpack.c.b16 %v619, %v619
        %v628 = vpack.c.b16 %v620, %v620
        %v629 = vpack.c.b16 %v621, %v621
        %s638 = sshra.s32 %s463, 3
        %s639 = sand.u32 %s463, 7
        %s640 = smul.addr %s638, 4
        %s641 = scalar_lea.vmem [#allocation2], %s640
        %642 = vst [vmem:[%s641] sm:$0xf] %v622
        %643 = vst [vmem:[%s641 + $0x4] sm:$0xf] %v623
        %644 = vst [vmem:[%s641 + $0x8] sm:$0xf] %v624
        %645 = vst [vmem:[%s641 + $0xc] sm:$0xf] %v625
        %646 = vst [vmem:[%s641 + $0x10] sm:$0xf] %v626
        %647 = vst [vmem:[%s641 + $0x14] sm:$0xf] %v627
        %648 = vst [vmem:[%s641 + $0x18] sm:$0xf] %v628
        %649 = vst [vmem:[%s641 + $0x1c] sm:$0xf] %v629
        %650 = vst [vmem:[%s247] sm:$0xf] %v622
        %651 = vst [vmem:[%s247 + $0x4] sm:$0xf] %v623
        %652 = vst [vmem:[%s247 + $0x8] sm:$0xf] %v624
        %653 = vst [vmem:[%s247 + $0xc] sm:$0xf] %v625
        %654 = vst [vmem:[%s247 + $0x10] sm:$0xf] %v626
        %655 = vst [vmem:[%s247 + $0x14] sm:$0xf] %v627
        %656 = vst [vmem:[%s247 + $0x18] sm:$0xf] %v628
        %657 = vst [vmem:[%s247 + $0x1c] sm:$0xf] %v629
      $region44: #{_forward_impl.1} parent=35 // pred_fallthru
        _
      %s658 = smul.u32 8, %s20
      %p659 = scmp.lt.s32.totalorder %s658, 7
      %s660 = scalar_select %p659, %s658, 7
      %s661 = smul.addr %s660, 4
      %s662 = scalar_lea.vmem %s4, %s661
      // Predicated region
      $region45: #{_forward_impl.1} parent=35 // pred_check
        %p663 = pneg %p143
      $region46: #{_forward_impl.1} parent=35 // pred_check_branch
        %665 = sbr.rel (%p663) target = $region48
      $region47: #{_forward_impl.1} parent=35 // pred_region
        %s666 = smul.u32 8, %s20
      $region48: #{_forward_impl.1} parent=35 // pred_fallthru
        _
      // Predicated region
      $region49: #{_forward_impl.1} parent=35 // pred_check
        %p667 = pneg %p143
      $region50: #{_forward_impl.1} parent=35 // pred_check_branch
        %669 = sbr.rel (%p667) target = $region52
      $region51: #{_forward_impl.1} parent=35 // pred_region
        %s670 = smul.u32 8, %s20
        %p671 = scmp.lt.s32.totalorder %s670, 7
        %s672 = scalar_select %p671, %s670, 7
        %s673 = smul.addr %s672, 4
        %s674 = scalar_lea.vmem %s4, %s673
      $region52: #{_forward_impl.1} parent=35 // pred_fallthru
        _
    $region36: #{_forward_impl.1} parent=5 // pred_fallthru
      _
    %p675 = scmp.le.s32.totalorder 2, %s10
    // Predicated region
    $region53: #{_forward_impl.1} parent=5 // pred_check
      %p676 = pneg %p675
    $region54: #{_forward_impl.1} parent=5 // pred_check_branch
      %678 = sbr.rel (%p676) target = $region56
    $region55: #{_forward_impl.1} parent=5 // pred_region
      %s679 = ssub.s32 %s10, 2
    $region56: #{_forward_impl.1} parent=5 // pred_fallthru
      _
  $region6: #{_forward_impl.1} parent=0 // loop_footer
    %s14 = sadd.s32 1, %s10
  $region7: #{_forward_impl.1} parent=0 // loop_footer_branch
    %9 = sbr.rel target = $region3
  $region8: #{_forward_impl.1} parent=0 // loop_exit
    _

</llo_original>
